<compile_context>
chip_gen: v6e
topology: v6e:2x2x1
jax: 0.10.0
libtpu: 0.0.40
codegen_flags: <defaults>
</compile_context>

<pallas_src>
import functools

import jax
import jax.numpy as jnp
from jax.experimental import pallas as pl
from jax.experimental.pallas import tpu as pltpu

EPS = 1e-5
_LANE = 128                        # feature dim padded to a multiple of this
_SUBLANE = 8                       # row-tile granularity
_VMEM_BUDGET = 48 * 1024 * 1024    # conservative working-set budget (v7x-safe)


def _round_up(x, m):
    return ((x + m - 1) // m) * m


def _cdiv(a, b):
    return -(-a // b)


def _const_block_spec(shape):
    """BlockSpec for a grid-invariant operand; single-buffered when the
    running JAX version supports pipeline_mode (constant index_map means
    double-buffering is pure VMEM waste)."""
    idx_map = lambda i: (0,) * len(shape)
    try:
        return pl.BlockSpec(shape, idx_map, pipeline_mode=pl.Buffered(1))
    except (TypeError, AttributeError):        # older API surface
        return pl.BlockSpec(shape, idx_map)


# --------------------------------------------------------------------------
# Kernel: fused  relu(x@W1'+b1') -> relu(.@W2'+b2') -> + x   (BN pre-folded)
# --------------------------------------------------------------------------
def _my_linear_simple_kernel(x_ref, w1_ref, b1_ref, w2_ref, b2_ref, out_ref):
    cdt = w1_ref.dtype                     # MXU operand dtype (bf16 or f32)

    y = jnp.dot(x_ref[...].astype(cdt), w1_ref[...],
                preferred_element_type=jnp.float32)
    y = jnp.maximum(y + b1_ref[...], 0.0)  # bias + ReLU in f32
    # TODO(synk): training-mode dropout / batch-statistics BN not implemented
    # (eval semantics: dropout = identity, BN folded into W'/b').
    y = jnp.dot(y.astype(cdt), w2_ref[...],
                preferred_element_type=jnp.float32)
    y = jnp.maximum(y + b2_ref[...], 0.0)

    # Re-read x for the residual instead of keeping it live across both
    # matmuls: lowers vreg pressure during the MXU phase.  Residual is f32.
    out_ref[...] = (x_ref[...].astype(jnp.float32) + y).astype(out_ref.dtype)


# --------------------------------------------------------------------------
# Wrapper: balanced row tiling, lane-dense layout, explicit VMEM budgeting.
# --------------------------------------------------------------------------
@functools.partial(jax.jit, static_argnames=("max_block_rows",))
def my_linear_simple(x, folded, *, max_block_rows=512):
    """x: (N, L).  folded: dict from fold_and_pad_params (BN pre-folded,
    feature dims zero-padded to a multiple of 128, weights bf16 or f32)."""
    n, l = x.shape
    lp = folded["w1"].shape[0]                       # padded feature dim
    io_itemsize = jnp.dtype(x.dtype).itemsize
    w_itemsize = jnp.dtype(folded["w1"].dtype).itemsize

    # ---- row tiling --------------------------------------------------------
    # Cap tm by the VMEM working set: x + out double-buffered in the caller
    # dtype, f32 intermediates, single-buffered weights + f32 biases.
    w_resident = 2 * lp * lp * w_itemsize + 2 * lp * 4
    per_row = 4 * lp * io_itemsize + 2 * lp * 4
    tm_cap = max(_SUBLANE,
                 ((_VMEM_BUDGET - w_resident) // per_row) // _SUBLANE * _SUBLANE)
    tm_cap = min(tm_cap, _round_up(max_block_rows, _SUBLANE))

    steps = _cdiv(n, tm_cap)
    if n > _SUBLANE:
        steps = max(steps, 2)            # >=2 grid steps: feed both v7x TCs
    tm = _round_up(_cdiv(n, steps), _SUBLANE)   # balanced: <=7 wasted rows/step
    n_pad = steps * tm

    # ---- pad only when needed ----------------------------------------------
    # Padded feature *columns* of the output stay exactly zero (zero weight
    # columns / bias entries).  Padded *rows* compute relu(b') garbage that is
    # sliced off below (wasted but correct).
    padded = (n_pad != n) or (lp != l)
    x_p = x if not padded else (
        jnp.zeros((n_pad, lp), x.dtype).at[:n, :l].set(x))

    row_spec = pl.BlockSpec((tm, lp), lambda i: (i, 0))
    w_spec = _const_block_spec((lp, lp))
    b_spec = _const_block_spec((1, lp))

    working_set = 4 * tm * lp * io_itemsize + w_resident + 2 * tm * lp * 4
    vmem_limit = min(64 << 20, max(32 << 20, int(1.35 * working_set)))

    flops = 2 * 2 * n_pad * lp * lp                  # two matmuls
    bytes_accessed = (2 * n_pad * lp * io_itemsize   # x in, out out
                      + 2 * lp * lp * w_itemsize     # weights
                      + 2 * lp * 4)                  # f32 biases

    out_p = pl.pallas_call(
        _my_linear_simple_kernel,
        out_shape=jax.ShapeDtypeStruct((n_pad, lp), x.dtype),
        grid=(steps,),
        in_specs=[row_spec, w_spec, b_spec, w_spec, b_spec],
        out_specs=row_spec,
        compiler_params=pltpu.CompilerParams(
            dimension_semantics=("parallel",),       # megacore sharding on v7x
            vmem_limit_bytes=vmem_limit),
        cost_estimate=pl.CostEstimate(
            flops=flops, transcendentals=0, bytes_accessed=bytes_accessed),
    )(x_p, folded["w1"], folded["b1"], folded["w2"], folded["b2"])

    return out_p if not padded else out_p[:n, :l]


# --------------------------------------------------------------------------
# Parameter construction (mirrors PyTorch defaults) + BN folding + padding.
# --------------------------------------------------------------------------
def init_raw_params(key, linear_size):
    """Linear: U(-k, k), k = 1/sqrt(fan_in).  BatchNorm1d: gamma=1, beta=0,
    running_mean=0, running_var=1 (fresh-module eval statistics)."""
    l = linear_size
    k = 1.0 / (l ** 0.5)
    ks = jax.random.split(key, 4)
    w1 = jax.random.uniform(ks[0], (l, l), jnp.float32, -k, k)   # (out, in)
    b1 = jax.random.uniform(ks[1], (l,), jnp.float32, -k, k)
    w2 = jax.random.uniform(ks[2], (l, l), jnp.float32, -k, k)
    b2 = jax.random.uniform(ks[3], (l,), jnp.float32, -k, k)
    ones = jnp.ones((l,), jnp.float32)
    zeros = jnp.zeros((l,), jnp.float32)
    return {
        "w1": w1, "b1": b1, "g1": ones, "be1": zeros, "m1": zeros, "v1": ones,
        "w2": w2, "b2": b2, "g2": ones, "be2": zeros, "m2": zeros, "v2": ones,
    }


def fold_and_pad_params(raw, *, lane_pad=_LANE, dtype=jnp.bfloat16):
    """Fold eval-mode BN into the Linear weights/biases and zero-pad feature
    dims to a multiple of `lane_pad`:
        W' = W^T * (gamma * rsqrt(var + eps))           -> (in, out), scaled
        b' = (b - mean) * gamma * rsqrt(var + eps) + beta
    Weights are stored in `dtype` (bf16 default -> bf16 MXU path); biases stay
    f32 (they are added to the f32 accumulator and are tiny).
    Pass lane_pad=256 on v6e/v7x when you control the hidden size (2x256^2
    MXU); 128 keeps FLOPs minimal for small l and is optimal on v5e."""
    l = raw["w1"].shape[0]
    lp = _round_up(max(l, lane_pad), lane_pad)

    def fold(w, b, g, be, m, v):
        scale = g * jax.lax.rsqrt(v + EPS)              # (l,)
        w_t = w.T * scale[None, :]                      # (in, out)
        b_f = (b - m) * scale + be                      # (l,)
        w_pad = jnp.zeros((lp, lp), dtype).at[:l, :l].set(w_t.astype(dtype))
        b_pad = jnp.zeros((1, lp), jnp.float32).at[0, :l].set(
            b_f.astype(jnp.float32))
        return w_pad, b_pad

    w1, b1 = fold(raw["w1"], raw["b1"], raw["g1"], raw["be1"],
                  raw["m1"], raw["v1"])
    w2, b2 = fold(raw["w2"], raw["b2"], raw["g2"], raw["be2"],
                  raw["m2"], raw["v2"])
    return {"w1": w1, "b1": b1, "w2": w2, "b2": b2}


def _reference(x, p):
    """Pure-JAX reference with *unfolded* BN (matches the PyTorch module)."""
    y = x @ p["w1"].T + p["b1"]
    y = (y - p["m1"]) / jnp.sqrt(p["v1"] + EPS) * p["g1"] + p["be1"]
    y = jnp.maximum(y, 0.0)
    y = y @ p["w2"].T + p["b2"]
    y = (y - p["m2"]) / jnp.sqrt(p["v2"] + EPS) * p["g2"] + p["be2"]
    y = jnp.maximum(y, 0.0)
    return x + y


if __name__ == "__main__":
    linear_size = 32
    batch = 8

    key = jax.random.PRNGKey(0)
    k_x, k_p = jax.random.split(key)
    x = jax.random.normal(k_x, (batch, linear_size), jnp.float32)

    raw = init_raw_params(k_p, linear_size)
    ref = _reference(x, raw)

    # f32-weight path: exact (up to rounding) vs the unfolded reference.
    folded_f32 = fold_and_pad_params(raw, dtype=jnp.float32)
    out_f32 = my_linear_simple(x, folded_f32)
    jax.block_until_ready(out_f32)
    assert out_f32.shape == (batch, linear_size)
    assert jnp.allclose(out_f32, ref, atol=1e-4, rtol=1e-4), \
        float(jnp.max(jnp.abs(out_f32 - ref)))

    # bf16-weight path (default fast path): looser tolerance for bf16 operands.
    folded_bf16 = fold_and_pad_params(raw)            # dtype=jnp.bfloat16
    out_bf16 = my_linear_simple(x, folded_bf16)
    jax.block_until_ready(out_bf16)
    assert out_bf16.shape == (batch, linear_size)
    assert jnp.allclose(out_bf16, ref, atol=5e-2, rtol=5e-2), \
        float(jnp.max(jnp.abs(out_bf16 - ref)))

    print("KERNEL_OK")
</pallas_src>

<mosaic_0001>
module attributes {stable_mosaic.version = 11 : i64} {
  func.func @_my_linear_simple_kernel(%arg0: i32, %arg1: memref<8x128xf32, #tpu.memory_space<vmem>>, %arg2: memref<128x128xf32, #tpu.memory_space<vmem>>, %arg3: memref<1x128xf32, #tpu.memory_space<vmem>>, %arg4: memref<128x128xf32, #tpu.memory_space<vmem>>, %arg5: memref<1x128xf32, #tpu.memory_space<vmem>>, %arg6: memref<8x128xf32, #tpu.memory_space<vmem>>) attributes {dimension_semantics = [#tpu.dimension_semantics<parallel>], iteration_bounds = array<i64: 1>, scalar_prefetch = 0 : i64, scratch_operands = 0 : i64, tpu.core_type = #tpu.core_type<tc>, window_params = [{transform_indices = @transform_0, window_bounds = array<i64: 8, 128>}, {pipeline_mode = #tpu.pipeline_mode<synchronous>, transform_indices = @transform_1, window_bounds = array<i64: 128, 128>}, {pipeline_mode = #tpu.pipeline_mode<synchronous>, transform_indices = @transform_2, window_bounds = array<i64: 1, 128>}, {pipeline_mode = #tpu.pipeline_mode<synchronous>, transform_indices = @transform_3, window_bounds = array<i64: 128, 128>}, {pipeline_mode = #tpu.pipeline_mode<synchronous>, transform_indices = @transform_4, window_bounds = array<i64: 1, 128>}, {transform_indices = @transform_5, window_bounds = array<i64: 8, 128>}]} {
    %c0 = arith.constant 0 : index
    %c0_0 = arith.constant 0 : index
    %0 = vector.load %arg1[%c0, %c0_0] : memref<8x128xf32, #tpu.memory_space<vmem>>, vector<8x128xf32>
    %c0_1 = arith.constant 0 : index
    %c0_2 = arith.constant 0 : index
    %1 = vector.load %arg2[%c0_1, %c0_2] : memref<128x128xf32, #tpu.memory_space<vmem>>, vector<128x128xf32>
    %cst = arith.constant dense<0.000000e+00> : vector<8x128xf32>
    %2 = tpu.matmul %0, %1, %cst {dimension_numbers = #tpu.dot_dimension_numbers<[1], [0], [0], [1], [0, 0, 1, 1], [], []>} : vector<8x128xf32>, vector<128x128xf32>, vector<8x128xf32> -> vector<8x128xf32>
    %c0_3 = arith.constant 0 : index
    %c0_4 = arith.constant 0 : index
    %3 = vector.load %arg3[%c0_3, %c0_4] : memref<1x128xf32, #tpu.memory_space<vmem>>, vector<1x128xf32>
    %4 = vector.broadcast %3 : vector<1x128xf32> to vector<8x128xf32>
    %5 = arith.addf %2, %4 : vector<8x128xf32>
    %cst_5 = arith.constant 0.000000e+00 : f32
    %6 = vector.broadcast %cst_5 : f32 to vector<8x128xf32>
    %7 = arith.maximumf %5, %6 : vector<8x128xf32>
    %c0_6 = arith.constant 0 : index
    %c0_7 = arith.constant 0 : index
    %8 = vector.load %arg4[%c0_6, %c0_7] : memref<128x128xf32, #tpu.memory_space<vmem>>, vector<128x128xf32>
    %cst_8 = arith.constant dense<0.000000e+00> : vector<8x128xf32>
    %9 = tpu.matmul %7, %8, %cst_8 {dimension_numbers = #tpu.dot_dimension_numbers<[1], [0], [0], [1], [0, 0, 1, 1], [], []>} : vector<8x128xf32>, vector<128x128xf32>, vector<8x128xf32> -> vector<8x128xf32>
    %c0_9 = arith.constant 0 : index
    %c0_10 = arith.constant 0 : index
    %10 = vector.load %arg5[%c0_9, %c0_10] : memref<1x128xf32, #tpu.memory_space<vmem>>, vector<1x128xf32>
    %11 = vector.broadcast %10 : vector<1x128xf32> to vector<8x128xf32>
    %12 = arith.addf %9, %11 : vector<8x128xf32>
    %cst_11 = arith.constant 0.000000e+00 : f32
    %13 = vector.broadcast %cst_11 : f32 to vector<8x128xf32>
    %14 = arith.maximumf %12, %13 : vector<8x128xf32>
    %c0_12 = arith.constant 0 : index
    %c0_13 = arith.constant 0 : index
    %15 = vector.load %arg1[%c0_12, %c0_13] : memref<8x128xf32, #tpu.memory_space<vmem>>, vector<8x128xf32>
    %16 = arith.addf %15, %14 : vector<8x128xf32>
    %c0_14 = arith.constant 0 : index
    %c0_15 = arith.constant 0 : index
    %17 = vector.load %arg6[%c0_14, %c0_15] : memref<8x128xf32, #tpu.memory_space<vmem>>, vector<8x128xf32>
    tpu.vector_store %arg6[%c0_14, %c0_15], %16 {strides = array<i32>} : memref<8x128xf32, #tpu.memory_space<vmem>>, vector<8x128xf32>,
    return
  }
  func.func @transform_0(%arg0: i32) -> (i32, i32) {
    %c0_i32 = arith.constant 0 : i32
    %c0_i32_0 = arith.constant 0 : i32
    return %arg0, %c0_i32 : i32, i32
  }
  func.func @transform_1(%arg0: i32) -> (i32, i32) {
    %c0_i32 = arith.constant 0 : i32
    %c0_i32_0 = arith.constant 0 : i32
    %c0_i32_1 = arith.constant 0 : i32
    return %c0_i32, %c0_i32_0 : i32, i32
  }
  func.func @transform_2(%arg0: i32) -> (i32, i32) {
    %c0_i32 = arith.constant 0 : i32
    %c0_i32_0 = arith.constant 0 : i32
    %c0_i32_1 = arith.constant 0 : i32
    return %c0_i32, %c0_i32_0 : i32, i32
  }
  func.func @transform_3(%arg0: i32) -> (i32, i32) {
    %c0_i32 = arith.constant 0 : i32
    %c0_i32_0 = arith.constant 0 : i32
    %c0_i32_1 = arith.constant 0 : i32
    return %c0_i32, %c0_i32_0 : i32, i32
  }
  func.func @transform_4(%arg0: i32) -> (i32, i32) {
    %c0_i32 = arith.constant 0 : i32
    %c0_i32_0 = arith.constant 0 : i32
    %c0_i32_1 = arith.constant 0 : i32
    return %c0_i32, %c0_i32_0 : i32, i32
  }
  func.func @transform_5(%arg0: i32) -> (i32, i32) {
    %c0_i32 = arith.constant 0 : i32
    %c0_i32_0 = arith.constant 0 : i32
    return %arg0, %c0_i32 : i32, i32
  }
}

</mosaic_0001>

<llo_original>
// kernel: my_linear_simple.1
$region0: #{my_linear_simple.1}
  #allocation0 [shape = 'u32[]', space=smem, size = 0x4, offset = 0x4, fixed_abs, tag = 'smem constant byte address 0x4 - core index']
  #allocation1 [shape = 'u32[144,128]{1,0:T(1,128)}', space=vmem, size = 0x12000, scoped, tag = 'internal scratch']
  %s0 = inlined_call_operand.vmem [shape: f32[8,128], index: 0, kind: input, shape index: {}]
  %s1 = inlined_call_operand.hbm [shape: f32[128,128], index: 1, kind: input, shape index: {}]
  %s2 = inlined_call_operand.vmem [shape: f32[1,128], index: 2, kind: input, shape index: {}]
  %s3 = inlined_call_operand.hbm [shape: f32[128,128], index: 3, kind: input, shape index: {}]
  %s4 = inlined_call_operand.vmem [shape: f32[1,128], index: 4, kind: input, shape index: {}]
  %s5 = inlined_call_operand.hbm [shape: f32[8,128], index: 5, kind: output, shape index: {}]
  %s6 = sld [smem:[#allocation0]]
  $region38: #{my_linear_simple.1} parent=0
    _
  %s8 = ssub.s32 1, %s6
  %s9 = scalar_select 0, %s8, %s6
  $region1: #{my_linear_simple.1} parent=0
    #allocation2 [shape = 'u8[65536]{0}', space=vmem, size = 0x10000, scoped, tag = 'input window, operand 1, single buffered']
    #allocation3 [shape = 's32[1]{0}', space=sflag, size = 0x4, scoped, tag = 'scoped memory for my_linear_simple.1']
    #allocation4 [shape = 's32[1]{0}', space=sflag, size = 0x4, scoped, tag = 'scoped memory for my_linear_simple.1']
    #allocation5 [shape = 'u8[65536]{0}', space=vmem, size = 0x10000, scoped, tag = 'input window, operand 3, single buffered']
    #allocation6 [shape = 's32[1]{0}', space=sflag, size = 0x4, scoped, tag = 'scoped memory for my_linear_simple.1']
    #allocation7 [shape = 'u8[4096]{0}', space=vmem, size = 0x1000, scoped, tag = 'output window, operand 0, single buffered']
    %10 = vsyncpa [#allocation3], 0
    %11 = vsyncpa [#allocation6], 0
    %12 = vsyncpa [#allocation4], 0
    // Predicated region
    $region2: #{my_linear_simple.1} parent=1 // pred_check
      _
    $region3: #{my_linear_simple.1} parent=1 // pred_check_branch
      %14 = sbr.rel (0) target = $region5
    $region4: #{my_linear_simple.1} parent=1 // pred_region
      _
    $region5: #{my_linear_simple.1} parent=1 // pred_fallthru
      _
    // Predicated region
    $region6: #{my_linear_simple.1} parent=1 // pred_check
      _
    $region7: #{my_linear_simple.1} parent=1 // pred_check_branch
      %16 = sbr.rel (0) target = $region9
    $region8: #{my_linear_simple.1} parent=1 // pred_region
      %s18 = ssub.s32 2048, 2048
      %19 = vsyncadd [#allocation3], %s18
      %s20 = sshll.u32 [#allocation2], 4
      %s21 = int_to_ptr.vmem [resolvable:$true] %s20
      %26 = dma.hbm_to_vmem [thread:$0]  %s1, 2048, %s21, [#allocation3], 128, 128, 8
    $region9: #{my_linear_simple.1} parent=1 // pred_fallthru
      _
    // Predicated region
    $region10: #{my_linear_simple.1} parent=1 // pred_check
      _
    $region11: #{my_linear_simple.1} parent=1 // pred_check_branch
      %28 = sbr.rel (0) target = $region13
    $region12: #{my_linear_simple.1} parent=1 // pred_region
      _
    $region13: #{my_linear_simple.1} parent=1 // pred_fallthru
      _
    // Predicated region
    $region14: #{my_linear_simple.1} parent=1 // pred_check
      _
    $region15: #{my_linear_simple.1} parent=1 // pred_check_branch
      %30 = sbr.rel (0) target = $region17
    $region16: #{my_linear_simple.1} parent=1 // pred_region
      %s32 = ssub.s32 2048, 2048
      %33 = vsyncadd [#allocation6], %s32
      %s34 = sshll.u32 [#allocation5], 4
      %s35 = int_to_ptr.vmem [resolvable:$true] %s34
      %40 = dma.hbm_to_vmem [thread:$0]  %s3, 2048, %s35, [#allocation6], 128, 128, 8
    $region17: #{my_linear_simple.1} parent=1 // pred_fallthru
      _
    // Predicated region
    $region18: #{my_linear_simple.1} parent=1 // pred_check
      _
    $region19: #{my_linear_simple.1} parent=1 // pred_check_branch
      %42 = sbr.rel (0) target = $region21
    $region20: #{my_linear_simple.1} parent=1 // pred_region
      _
    $region21: #{my_linear_simple.1} parent=1 // pred_fallthru
      _
    // Predicated region
    $region22: #{my_linear_simple.1} parent=1 // pred_check
      _
    $region23: #{my_linear_simple.1} parent=1 // pred_check_branch
      %44 = sbr.rel (0) target = $region25
    $region24: #{my_linear_simple.1} parent=1 // pred_region
      %45 = dma.done [#allocation3], 2048
    $region25: #{my_linear_simple.1} parent=1 // pred_fallthru
      _
    // Predicated region
    $region26: #{my_linear_simple.1} parent=1 // pred_check
      _
    $region27: #{my_linear_simple.1} parent=1 // pred_check_branch
      %47 = sbr.rel (0) target = $region29
    $region28: #{my_linear_simple.1} parent=1 // pred_region
      %48 = dma.done [#allocation6], 2048
    $region29: #{my_linear_simple.1} parent=1 // pred_fallthru
      _
    %v49 = vld [vmem:[%s0] sm:$0xff]
    %v50 = vld [vmem:[#allocation2] sm:$0xff]
    %v51 = vld [vmem:[#allocation2 + $0x8] sm:$0xff]
    %v52 = vld [vmem:[#allocation2 + $0x10] sm:$0xff]
    %v53 = vld [vmem:[#allocation2 + $0x18] sm:$0xff]
    %v54 = vld [vmem:[#allocation2 + $0x20] sm:$0xff]
    %v55 = vld [vmem:[#allocation2 + $0x28] sm:$0xff]
    %v56 = vld [vmem:[#allocation2 + $0x30] sm:$0xff]
    %v57 = vld [vmem:[#allocation2 + $0x38] sm:$0xff]
    %v58 = vld [vmem:[#allocation2 + $0x40] sm:$0xff]
    %v59 = vld [vmem:[#allocation2 + $0x48] sm:$0xff]
    %v60 = vld [vmem:[#allocation2 + $0x50] sm:$0xff]
    %v61 = vld [vmem:[#allocation2 + $0x58] sm:$0xff]
    %v62 = vld [vmem:[#allocation2 + $0x60] sm:$0xff]
    %v63 = vld [vmem:[#allocation2 + $0x68] sm:$0xff]
    %v64 = vld [vmem:[#allocation2 + $0x70] sm:$0xff]
    %v65 = vld [vmem:[#allocation2 + $0x78] sm:$0xff]
    %v66 = vld [vmem:[%s2] sm:$0x1]
    %v68 = vlaneseq
    %v69 = vshrl.u32 %v68, 7
    %v70 = vsub.s32 0, %v69
    %v71 = vrot.slane %v66, %v70
    %73 = vmatprep.subr.mxu0 0.0
    %74 = vmatpush1.msra.mxu0 %v65
    %75 = vmatprep.subr.mxu0 0.0
    %76 = vmatpush1.msra.mxu0 %v64
    %77 = vmatprep.subr.mxu0 0.0
    %78 = vmatpush1.msra.mxu0 %v63
    %79 = vmatprep.subr.mxu0 0.0
    %80 = vmatpush1.msra.mxu0 %v62
    %81 = vmatprep.subr.mxu0 0.0
    %82 = vmatpush1.msra.mxu0 %v61
    %83 = vmatprep.subr.mxu0 0.0
    %84 = vmatpush1.msra.mxu0 %v60
    %85 = vmatprep.subr.mxu0 0.0
    %86 = vmatpush1.msra.mxu0 %v59
    %87 = vmatprep.subr.mxu0 0.0
    %88 = vmatpush1.msra.mxu0 %v58
    %89 = vmatprep.subr.mxu0 0.0
    %90 = vmatpush1.msra.mxu0 %v57
    %91 = vmatprep.subr.mxu0 0.0
    %92 = vmatpush1.msra.mxu0 %v56
    %93 = vmatprep.subr.mxu0 0.0
    %94 = vmatpush1.msra.mxu0 %v55
    %95 = vmatprep.subr.mxu0 0.0
    %96 = vmatpush1.msra.mxu0 %v54
    %97 = vmatprep.subr.mxu0 0.0
    %98 = vmatpush1.msra.mxu0 %v53
    %99 = vmatprep.subr.mxu0 0.0
    %100 = vmatpush1.msra.mxu0 %v52
    %101 = vmatprep.subr.mxu0 0.0
    %102 = vmatpush1.msra.mxu0 %v51
    %103 = vmatprep.subr.mxu0 0.0
    %104 = vmatpush1.msra.mxu0 %v50
    %105 = vmatprep.subr.mxu0 0.0
    %106 = vmatpush2.msra.mxu0 0.0
    %107 = vmatprep.subr.mxu0 0.0
    %108 = vmatpush2.msra.mxu0 0.0
    %109 = vmatprep.subr.mxu0 0.0
    %110 = vmatpush2.msra.mxu0 0.0
    %111 = vmatprep.subr.mxu0 0.0
    %112 = vmatpush2.msra.mxu0 0.0
    %113 = vmatprep.subr.mxu0 0.0
    %114 = vmatpush2.msra.mxu0 0.0
    %115 = vmatprep.subr.mxu0 0.0
    %116 = vmatpush2.msra.mxu0 0.0
    %117 = vmatprep.subr.mxu0 0.0
    %118 = vmatpush2.msra.mxu0 0.0
    %119 = vmatprep.subr.mxu0 0.0
    %120 = vmatpush2.msra.mxu0 0.0
    %121 = vmatprep.subr.mxu0 0.0
    %122 = vmatpush2.msra.mxu0 0.0
    %123 = vmatprep.subr.mxu0 0.0
    %124 = vmatpush2.msra.mxu0 0.0
    %125 = vmatprep.subr.mxu0 0.0
    %126 = vmatpush2.msra.mxu0 0.0
    %127 = vmatprep.subr.mxu0 0.0
    %128 = vmatpush2.msra.mxu0 0.0
    %129 = vmatprep.subr.mxu0 0.0
    %130 = vmatpush2.msra.mxu0 0.0
    %131 = vmatprep.subr.mxu0 0.0
    %132 = vmatpush2.msra.mxu0 0.0
    %133 = vmatprep.subr.mxu0 0.0
    %134 = vmatpush2.msra.mxu0 0.0
    %135 = vmatprep.subr.mxu0 0.0
    %136 = vmatpush2.msra.mxu0 0.0
    %137 = vmatprep.mubr.f32.mxu0 0.0
    %138 = vmatmul.mubr.f32.gmra.mxu0 %v49
    %v139 = vpop.f32.mrf.mxu0
    %v140 = vadd.f32 %v71, %v139
    %v141 = vpop.f32.mrf.mxu0
    %142 = vdwg.mxu0
    %v143 = vmax.f32 %v140, 0.0
    %v144 = vld [vmem:[#allocation5] sm:$0xff]
    %v145 = vld [vmem:[#allocation5 + $0x8] sm:$0xff]
    %v146 = vld [vmem:[#allocation5 + $0x10] sm:$0xff]
    %v147 = vld [vmem:[#allocation5 + $0x18] sm:$0xff]
    %v148 = vld [vmem:[#allocation5 + $0x20] sm:$0xff]
    %v149 = vld [vmem:[#allocation5 + $0x28] sm:$0xff]
    %v150 = vld [vmem:[#allocation5 + $0x30] sm:$0xff]
    %v151 = vld [vmem:[#allocation5 + $0x38] sm:$0xff]
    %v152 = vld [vmem:[#allocation5 + $0x40] sm:$0xff]
    %v153 = vld [vmem:[#allocation5 + $0x48] sm:$0xff]
    %v154 = vld [vmem:[#allocation5 + $0x50] sm:$0xff]
    %v155 = vld [vmem:[#allocation5 + $0x58] sm:$0xff]
    %v156 = vld [vmem:[#allocation5 + $0x60] sm:$0xff]
    %v157 = vld [vmem:[#allocation5 + $0x68] sm:$0xff]
    %v158 = vld [vmem:[#allocation5 + $0x70] sm:$0xff]
    %v159 = vld [vmem:[#allocation5 + $0x78] sm:$0xff]
    %v160 = vld [vmem:[%s4] sm:$0x1]
    %v162 = vlaneseq
    %v163 = vshrl.u32 %v162, 7
    %v164 = vsub.s32 0, %v163
    %v165 = vrot.slane %v160, %v164
    %167 = vmatprep.subr.mxu0 0.0
    %168 = vmatpush1.msra.mxu0 %v159
    %169 = vmatprep.subr.mxu0 0.0
    %170 = vmatpush1.msra.mxu0 %v158
    %171 = vmatprep.subr.mxu0 0.0
    %172 = vmatpush1.msra.mxu0 %v157
    %173 = vmatprep.subr.mxu0 0.0
    %174 = vmatpush1.msra.mxu0 %v156
    %175 = vmatprep.subr.mxu0 0.0
    %176 = vmatpush1.msra.mxu0 %v155
    %177 = vmatprep.subr.mxu0 0.0
    %178 = vmatpush1.msra.mxu0 %v154
    %179 = vmatprep.subr.mxu0 0.0
    %180 = vmatpush1.msra.mxu0 %v153
    %181 = vmatprep.subr.mxu0 0.0
    %182 = vmatpush1.msra.mxu0 %v152
    %183 = vmatprep.subr.mxu0 0.0
    %184 = vmatpush1.msra.mxu0 %v151
    %185 = vmatprep.subr.mxu0 0.0
    %186 = vmatpush1.msra.mxu0 %v150
    %187 = vmatprep.subr.mxu0 0.0
    %188 = vmatpush1.msra.mxu0 %v149
    %189 = vmatprep.subr.mxu0 0.0
    %190 = vmatpush1.msra.mxu0 %v148
    %191 = vmatprep.subr.mxu0 0.0
    %192 = vmatpush1.msra.mxu0 %v147
    %193 = vmatprep.subr.mxu0 0.0
    %194 = vmatpush1.msra.mxu0 %v146
    %195 = vmatprep.subr.mxu0 0.0
    %196 = vmatpush1.msra.mxu0 %v145
    %197 = vmatprep.subr.mxu0 0.0
    %198 = vmatpush1.msra.mxu0 %v144
    %199 = vmatprep.subr.mxu0 0.0
    %200 = vmatpush2.msra.mxu0 0.0
    %201 = vmatprep.subr.mxu0 0.0
    %202 = vmatpush2.msra.mxu0 0.0
    %203 = vmatprep.subr.mxu0 0.0
    %204 = vmatpush2.msra.mxu0 0.0
    %205 = vmatprep.subr.mxu0 0.0
    %206 = vmatpush2.msra.mxu0 0.0
    %207 = vmatprep.subr.mxu0 0.0
    %208 = vmatpush2.msra.mxu0 0.0
    %209 = vmatprep.subr.mxu0 0.0
    %210 = vmatpush2.msra.mxu0 0.0
    %211 = vmatprep.subr.mxu0 0.0
    %212 = vmatpush2.msra.mxu0 0.0
    %213 = vmatprep.subr.mxu0 0.0
    %214 = vmatpush2.msra.mxu0 0.0
    %215 = vmatprep.subr.mxu0 0.0
    %216 = vmatpush2.msra.mxu0 0.0
    %217 = vmatprep.subr.mxu0 0.0
    %218 = vmatpush2.msra.mxu0 0.0
    %219 = vmatprep.subr.mxu0 0.0
    %220 = vmatpush2.msra.mxu0 0.0
    %221 = vmatprep.subr.mxu0 0.0
    %222 = vmatpush2.msra.mxu0 0.0
    %223 = vmatprep.subr.mxu0 0.0
    %224 = vmatpush2.msra.mxu0 0.0
    %225 = vmatprep.subr.mxu0 0.0
    %226 = vmatpush2.msra.mxu0 0.0
    %227 = vmatprep.subr.mxu0 0.0
    %228 = vmatpush2.msra.mxu0 0.0
    %229 = vmatprep.subr.mxu0 0.0
    %230 = vmatpush2.msra.mxu0 0.0
    %231 = vmatprep.mubr.f32.mxu0 0.0
    %232 = vmatmul.mubr.f32.gmra.mxu0 %v143
    %v233 = vpop.f32.mrf.mxu0
    %v234 = vadd.f32 %v165, %v233
    %v235 = vpop.f32.mrf.mxu0
    %236 = vdwg.mxu0
    %v237 = vmax.f32 %v234, 0.0
    %v238 = vadd.f32 %v49, %v237
    %239 = vst [vmem:[#allocation7] sm:$0xff] %v238
    // Predicated region
    $region30: #{my_linear_simple.1} parent=1 // pred_check
      _
    $region31: #{my_linear_simple.1} parent=1 // pred_check_branch
      %241 = sbr.rel (0) target = $region33
    $region32: #{my_linear_simple.1} parent=1 // pred_region
      %s243 = ssub.s32 128, 128
      %244 = vsyncadd [#allocation4], %s243
      %s246 = sshll.u32 [#allocation7], 4
      %s247 = int_to_ptr.vmem [resolvable:$true] %s246
      %249 = dma.vmem_to_hbm [thread:$0]  %s247, 128, %s5, [#allocation4]
    $region33: #{my_linear_simple.1} parent=1 // pred_fallthru
      _
    // Predicated region
    $region34: #{my_linear_simple.1} parent=1 // pred_check
      _
    $region35: #{my_linear_simple.1} parent=1 // pred_check_branch
      %251 = sbr.rel (0) target = $region37
    $region36: #{my_linear_simple.1} parent=1 // pred_region
      %252 = dma.done [#allocation4], 128
    $region37: #{my_linear_simple.1} parent=1 // pred_fallthru
      _
    %253 = vsyncpa [#allocation3], 1
    %254 = vsyncpa [#allocation6], 1
    %255 = vsyncpa [#allocation4], 1

</llo_original>
